<compile_context>
chip_gen: v5e
topology: v5e:2x2
jax: 0.10.0
libtpu: 0.0.40
codegen_flags: <defaults>
</compile_context>

<pallas_src>
import numpy as np
import jax
import jax.numpy as jnp
from jax.experimental import pallas as pl
from jax.experimental.pallas import tpu as pltpu

_LANE = 128
_SUBLANE = 8
# Per-tile byte budget for the copy kernel. With input+output double-buffered
# that is <= 4x this value of VMEM, comfortably under v5e's 16 MiB scoped
# default and v7x's 64 MiB physical VMEM.
_TILE_BYTE_BUDGET = 2 * 1024 * 1024


def _identity_copy_kernel(x_ref, o_ref):
    # Pure identity copy of one lane-dense tile (the op itself has no math).
    o_ref[...] = x_ref[...]


def _prod(dims):
    return int(np.prod(dims, dtype=np.int64)) if len(dims) else 1


def _choose_slab(total):
    """Pick a lane/sublane-friendly (rows, cols) factorization of `total`.

    Prefers cols that are a multiple of 128 with rows a multiple of 8.
    Returns None if no lane-dense factorization exists.
    """
    for cols in (2048, 1024, 512, 256, 128):
        if total % cols == 0 and (total // cols) % _SUBLANE == 0:
            return total // cols, cols
    for cols in (2048, 1024, 512, 256, 128):
        if total % cols == 0:
            return total // cols, cols
    return None


def _choose_row_tile(rows, cols, itemsize):
    """Largest multiple-of-8 divisor of `rows` whose tile fits the budget."""
    if rows % _SUBLANE != 0:
        return rows  # full-extent escape hatch (still a legal block shape)
    best = _SUBLANE
    t = _SUBLANE
    while t <= rows and t <= 4096:
        if rows % t == 0 and t * cols * itemsize <= _TILE_BYTE_BUDGET:
            best = t
        t += _SUBLANE
    return best


def view_forward(x, target_shape):
    """Default path: exact PyTorch `.view` semantics, metadata-only reshape.

    This is the recommended implementation — zero FLOPs, zero HBM traffic.
    """
    b = x.shape[0]
    f = _prod(x.shape[1:])
    f_t = _prod(tuple(target_shape))
    assert f == f_t, (
        f"view: cannot reshape {x.shape} to (batch, {tuple(target_shape)}) — "
        f"{f} vs {f_t} elements per batch")
    return jnp.reshape(x, (b,) + tuple(target_shape))


def view_forward_pallas(x, target_shape):
    """Same semantics, but the data is materialized through a Pallas copy
    kernel (only useful when an explicit fresh HBM copy is desired)."""
    b = x.shape[0]
    f = _prod(x.shape[1:])
    f_t = _prod(tuple(target_shape))
    assert f == f_t, (
        f"view: cannot reshape {x.shape} to (batch, {tuple(target_shape)}) — "
        f"{f} vs {f_t} elements per batch")
    out_shape = (b,) + tuple(target_shape)

    total = b * f
    itemsize = jnp.dtype(x.dtype).itemsize
    slab = _choose_slab(total)
    if slab is None:
        # TODO(synk): no lane-dense factorization (total not a multiple of
        # 128); fall back to the metadata-only reshape instead of a padded
        # copy kernel.
        return jnp.reshape(x, out_shape)

    rows, cols = slab
    tile_rows = _choose_row_tile(rows, cols, itemsize)
    grid = (rows // tile_rows,)

    # Row-major flatten: bit-exact with torch's contiguous .view ordering.
    x2d = jnp.reshape(x, (rows, cols))

    out2d = pl.pallas_call(
        _identity_copy_kernel,
        out_shape=jax.ShapeDtypeStruct((rows, cols), x.dtype),
        grid_spec=pltpu.PrefetchScalarGridSpec(
            num_scalar_prefetch=0,
            grid=grid,
            in_specs=[pl.BlockSpec((tile_rows, cols), lambda i: (i, 0))],
            out_specs=pl.BlockSpec((tile_rows, cols), lambda i: (i, 0)),
        ),
        # Donate the flattened input buffer as the output slab: no second HBM
        # allocation, and XLA may elide the writeback.
        input_output_aliases={0: 0},
        cost_estimate=pl.CostEstimate(
            flops=0,
            transcendentals=0,
            bytes_accessed=2 * total * itemsize,
        ),
        compiler_params=pltpu.CompilerParams(
            dimension_semantics=("parallel",),
            vmem_limit_bytes=32 * 1024 * 1024,
        ),
    )(x2d)

    # Metadata-only reshape to the requested view shape.
    return jnp.reshape(out2d, out_shape)


if __name__ == "__main__":
    # Example consistent with typical use: reshape an NCHW feature map
    # (2, 4, 16, 16) into (2, 16, 64), i.e. View(shape=(16, 64)).
    key = jax.random.PRNGKey(0)
    x = jax.random.normal(key, (2, 4, 16, 16), dtype=jnp.float32)
    target_shape = (16, 64)

    ref = jnp.reshape(x, (x.shape[0],) + target_shape)

    # 1) Default (recommended) path: metadata-only view.
    out_fast = jax.block_until_ready(view_forward(x, target_shape))
    assert out_fast.shape == (2, 16, 64), out_fast.shape
    assert out_fast.dtype == x.dtype
    np.testing.assert_array_equal(np.asarray(out_fast), np.asarray(ref))

    # 2) Pallas copy-kernel path (jit so the flattened input is a donatable
    #    intermediate for input_output_aliases).
    pallas_view = jax.jit(view_forward_pallas, static_argnums=1)
    out_pallas = jax.block_until_ready(pallas_view(x, target_shape))
    assert out_pallas.shape == (2, 16, 64), out_pallas.shape
    assert out_pallas.dtype == x.dtype
    np.testing.assert_array_equal(np.asarray(out_pallas), np.asarray(ref))

    print("KERNEL_OK")
</pallas_src>

<mosaic_0001>
module attributes {stable_mosaic.version = 11 : i64} {
  func.func @_identity_copy_kernel(%arg0: i32, %arg1: memref<8x256xf32, #tpu.memory_space<vmem>>, %arg2: memref<8x256xf32, #tpu.memory_space<vmem>>) attributes {dimension_semantics = [#tpu.dimension_semantics<parallel>], iteration_bounds = array<i64: 1>, scalar_prefetch = 0 : i64, scratch_operands = 0 : i64, tpu.core_type = #tpu.core_type<tc>, window_params = [{transform_indices = @transform_0, window_bounds = array<i64: 8, 256>}, {transform_indices = @transform_1, window_bounds = array<i64: 8, 256>}]} {
    %c0 = arith.constant 0 : index
    %c0_0 = arith.constant 0 : index
    %0 = vector.load %arg1[%c0, %c0_0] : memref<8x256xf32, #tpu.memory_space<vmem>>, vector<8x256xf32>
    %c0_1 = arith.constant 0 : index
    %c0_2 = arith.constant 0 : index
    %1 = vector.load %arg2[%c0_1, %c0_2] : memref<8x256xf32, #tpu.memory_space<vmem>>, vector<8x256xf32>
    tpu.vector_store %arg2[%c0_1, %c0_2], %0 {strides = array<i32>} : memref<8x256xf32, #tpu.memory_space<vmem>>, vector<8x256xf32>,
    return
  }
  func.func @transform_0(%arg0: i32) -> (i32, i32) {
    %c0_i32 = arith.constant 0 : i32
    %c0_i32_0 = arith.constant 0 : i32
    return %arg0, %c0_i32 : i32, i32
  }
  func.func @transform_1(%arg0: i32) -> (i32, i32) {
    %c0_i32 = arith.constant 0 : i32
    %c0_i32_0 = arith.constant 0 : i32
    return %arg0, %c0_i32 : i32, i32
  }
}

</mosaic_0001>

<llo_original>
// kernel: view_forward_pallas.1
$region0: #{view_forward_pallas.1}
  #allocation0 [shape = 'u32[]', space=smem, size = 0x4, offset = 0x4, fixed_abs, tag = 'smem constant byte address 0x4 - core index']
  #allocation1 [shape = 'u32[72,128]{1,0:T(1,128)}', space=vmem, size = 0x9000, scoped, tag = 'internal scratch']
  %s0 = inlined_call_operand.vmem [shape: f32[8,256], index: 0, kind: input, shape index: {}, may-alias: {0,1}]
  %s1 = inlined_call_operand.vmem [shape: f32[8,256], index: 1, kind: output, shape index: {}, may-alias: {0,1}]
  %s2 = sld [smem:[#allocation0]]
  $region14: #{view_forward_pallas.1} parent=0
    _
  %s4 = ssub.s32 1, %s2
  %s5 = scalar_select 0, %s4, %s2
  // Predicated region
  $region2: #{view_forward_pallas.1} parent=0 // pred_check
    _
  $region3: #{view_forward_pallas.1} parent=0 // pred_check_branch
    %7 = sbr.rel (0) target = $region5
  $region4: #{view_forward_pallas.1} parent=0 // pred_region
    _
  $region5: #{view_forward_pallas.1} parent=0 // pred_fallthru
    _
  %v8 = vld [vmem:[%s0] sm:$0xff]
  %v9 = vld [vmem:[%s0 + $0x8] sm:$0xff]
  %10 = vst [vmem:[%s1] sm:$0xff] %v8
  %11 = vst [vmem:[%s1 + $0x8] sm:$0xff] %v9
  // Predicated region
  $region6: #{view_forward_pallas.1} parent=0 // pred_check
    _
  $region7: #{view_forward_pallas.1} parent=0 // pred_check_branch
    %13 = sbr.rel (0) target = $region9
  $region8: #{view_forward_pallas.1} parent=0 // pred_region
    _
  $region9: #{view_forward_pallas.1} parent=0 // pred_fallthru
    _
  // Predicated region
  $region10: #{view_forward_pallas.1} parent=0 // pred_check
    _
  $region11: #{view_forward_pallas.1} parent=0 // pred_check_branch
    %15 = sbr.rel (0) target = $region13
  $region12: #{view_forward_pallas.1} parent=0 // pred_region
    _
  $region13: #{view_forward_pallas.1} parent=0 // pred_fallthru
    _

</llo_original>
